<compile_context>
chip_gen: v5e
topology: v5e:2x2
jax: 0.10.0
libtpu: 0.0.40
codegen_flags: <defaults>
</compile_context>

<pallas_src>
import functools

import jax
import jax.numpy as jnp
from jax import lax
from jax.experimental import pallas as pl
from jax.experimental.pallas import tpu as pltpu

_DEFAULT_BLOCK_BUDGET = 4 * 1024 * 1024   # bytes per output block buffer (double-buffered)
_MAX_TILE_ROWS = 512                      # measured HBM-roofline plateau


def _round_up(x, m):
    return ((x + m - 1) // m) * m


def _pick_s_tile(S, D, itemsize, block_budget_bytes):
    """Rows per grid step: as big as the VMEM budget allows, multiple of 8."""
    row_bytes = max(1, D * itemsize)
    budget_rows = max(8, block_budget_bytes // row_bytes)
    s_tile = int(min(_MAX_TILE_ROWS, budget_rows))
    s_tile = max(8, (s_tile // 8) * 8)
    s_needed = _round_up(S, 8)
    s_tile = min(s_tile, s_needed)
    # Keep >= 2 grid steps when possible so "parallel" gives the second
    # TensorCore work on v7x (measured-neutral on v5e/v6e).
    if s_tile >= s_needed and s_needed >= 16:
        s_tile = _round_up(s_needed // 2, 8)
    return s_tile


def _compiler_params(block_bytes):
    vmem_limit = int(max(32 * 1024 * 1024,
                         min(128 * 1024 * 1024, 2 * block_bytes + (8 << 20))))
    return pltpu.CompilerParams(
        dimension_semantics=("parallel",),
        vmem_limit_bytes=vmem_limit,
    )


# --------------------------------------------------------------------------
# General gather path: arbitrary position ids.
# --------------------------------------------------------------------------
def _gather_kernel(pos_ref, table_hbm, out_ref, sems, *, s_tile, sem_pool):
    """Gather s_tile table rows (ids in SMEM) straight into the output block.

    pos_ref:   (S_pad,)     int32 ids in SMEM (scalar prefetch)
    table_hbm: (L, D)       embedding table left in HBM (memory_space=pl.ANY)
    out_ref:   (s_tile, D)  output VMEM block for this grid step (DMA dst)
    sems:      (sem_pool,)  rotating DMA semaphore pool
    """
    base = pl.program_id(0) * s_tile

    def wait_slot(slot):
        # Only shape (byte count) and the semaphore matter for the wait.
        pltpu.make_async_copy(
            table_hbm.at[pl.ds(0, 1), :],
            out_ref.at[pl.ds(0, 1), :],
            sems.at[slot]).wait()

    def issue(r, carry):
        slot = r % sem_pool

        # Free the semaphore (copy issued at r - sem_pool) before reusing it.
        @pl.when(r >= sem_pool)
        def _():
            wait_slot(slot)

        pid = pos_ref[base + r]
        pltpu.make_async_copy(
            table_hbm.at[pl.ds(pid, 1), :],     # (1, D) row in HBM
            out_ref.at[pl.ds(r, 1), :],         # (1, D) row of the output block
            sems.at[slot]).start()
        return carry

    lax.fori_loop(0, s_tile, issue, 0, unroll=min(8, s_tile))

    def drain(i, carry):
        wait_slot(i)
        return carry

    lax.fori_loop(0, min(sem_pool, s_tile), drain, 0, unroll=True)


def trainable_position_encoding(pos_ids, table, *, s_tile=None,
                                block_budget_bytes=_DEFAULT_BLOCK_BUDGET):
    """Embedding lookup: pos_ids (S,) int, table (L, D) -> (S, D)."""
    S = pos_ids.shape[0]
    L, D = table.shape
    dtype = table.dtype
    itemsize = jnp.dtype(dtype).itemsize

    if s_tile is None:
        s_tile = _pick_s_tile(S, D, itemsize, block_budget_bytes)
    s_tile = max(8, _round_up(int(s_tile), 8))

    # Clamp ids so a row DMA can never go out of bounds (PyTorch would raise).
    pos = jnp.clip(pos_ids.astype(jnp.int32), 0, L - 1)

    s_pad = _round_up(S, s_tile)
    if s_pad != S:
        pos = jnp.pad(pos, (0, s_pad - S))      # padded ids gather row 0; sliced off
    n_tiles = s_pad // s_tile
    sem_pool = min(16, s_tile)                   # 8 or 16 DMAs in flight is plenty
    block_bytes = s_tile * D * itemsize

    kernel = functools.partial(_gather_kernel, s_tile=s_tile, sem_pool=sem_pool)

    out = pl.pallas_call(
        kernel,
        out_shape=jax.ShapeDtypeStruct((s_pad, D), dtype),
        grid_spec=pltpu.PrefetchScalarGridSpec(
            num_scalar_prefetch=1,                       # ids -> SMEM
            grid=(n_tiles,),
            in_specs=[pl.BlockSpec(memory_space=pl.ANY)],  # table stays in HBM
            out_specs=pl.BlockSpec((s_tile, D), lambda t, pos: (t, 0)),
            scratch_shapes=[pltpu.SemaphoreType.DMA((sem_pool,))],
        ),
        compiler_params=_compiler_params(block_bytes),
        cost_estimate=pl.CostEstimate(
            flops=0, transcendentals=0,
            bytes_accessed=2 * s_pad * D * itemsize + s_pad * 4),
    )(pos, table)

    return out[:S]


# --------------------------------------------------------------------------
# Contiguous fast path: pos_ids == arange(start, start + length).
# --------------------------------------------------------------------------
def _contiguous_kernel(start_ref, table_hbm, out_ref, sems, *, s_tile, n_tiles, tail):
    t = pl.program_id(0)
    base = start_ref[0] + t * s_tile

    @pl.when(t < n_tiles - 1)
    def _():
        cp = pltpu.make_async_copy(
            table_hbm.at[pl.ds(base, s_tile), :], out_ref, sems.at[0])
        cp.start()
        cp.wait()

    @pl.when(t == n_tiles - 1)
    def _():
        # Last step copies only the valid tail rows; the rest of the block is
        # padding that gets sliced off in the wrapper.
        cp = pltpu.make_async_copy(
            table_hbm.at[pl.ds(base, tail), :],
            out_ref.at[pl.ds(0, tail), :],
            sems.at[0])
        cp.start()
        cp.wait()


def trainable_position_encoding_contiguous(table, start, length, *, s_tile=None,
                                           block_budget_bytes=_DEFAULT_BLOCK_BUDGET):
    """Fast path for pos_ids = arange(start, start+length): one block DMA per step."""
    L, D = table.shape
    dtype = table.dtype
    itemsize = jnp.dtype(dtype).itemsize
    S = int(length)
    if S > L:
        raise ValueError(f"length {S} exceeds table rows {L}")

    if s_tile is None:
        s_tile = _pick_s_tile(S, D, itemsize, block_budget_bytes)
    s_tile = max(8, _round_up(int(s_tile), 8))
    s_pad = _round_up(S, s_tile)
    n_tiles = s_pad // s_tile
    tail = S - (n_tiles - 1) * s_tile            # static rows in the last step
    block_bytes = s_tile * D * itemsize

    # Clamp so [start, start+S) stays inside the table (PyTorch would raise).
    start_arr = jnp.clip(jnp.asarray(start, jnp.int32).reshape((1,)), 0, L - S)

    kernel = functools.partial(_contiguous_kernel,
                               s_tile=s_tile, n_tiles=n_tiles, tail=tail)

    out = pl.pallas_call(
        kernel,
        out_shape=jax.ShapeDtypeStruct((s_pad, D), dtype),
        grid_spec=pltpu.PrefetchScalarGridSpec(
            num_scalar_prefetch=1,                       # start offset -> SMEM
            grid=(n_tiles,),
            in_specs=[pl.BlockSpec(memory_space=pl.ANY)],
            out_specs=pl.BlockSpec((s_tile, D), lambda t, start: (t, 0)),
            scratch_shapes=[pltpu.SemaphoreType.DMA((1,))],
        ),
        compiler_params=_compiler_params(block_bytes),
        cost_estimate=pl.CostEstimate(
            flops=0, transcendentals=0,
            bytes_accessed=2 * s_pad * D * itemsize),
    )(start_arr, table)

    return out[:S]


if __name__ == "__main__":
    key = jax.random.PRNGKey(0)
    key, k_ids, k_ids2 = jax.random.split(key, 3)

    max_sequence_length = 16
    d_model = 32
    seq_len = 8

    pos_ids = jax.random.randint(
        k_ids, (seq_len,), 0, max_sequence_length, dtype=jnp.int32)

    # Module semantics: nn.init.constant(pe.weight, 0.0) -> zero table.
    zero_table = jnp.zeros((max_sequence_length, d_model), dtype=jnp.float32)
    out0 = jax.block_until_ready(trainable_position_encoding(pos_ids, zero_table))
    assert out0.shape == (seq_len, d_model)
    assert jnp.allclose(out0, jnp.zeros((seq_len, d_model), jnp.float32))

    # Non-trivial table (row i filled with value i) so a wrong gather is caught.
    test_table = jnp.broadcast_to(
        jnp.arange(max_sequence_length, dtype=jnp.float32)[:, None],
        (max_sequence_length, d_model))

    out1 = jax.block_until_ready(trainable_position_encoding(pos_ids, test_table))
    assert out1.shape == (seq_len, d_model)
    assert jnp.allclose(out1, jnp.take(test_table, pos_ids, axis=0))

    # Tail handling: S not a multiple of the tile (exercises padding + 2 grid steps).
    pos_ids2 = jax.random.randint(
        k_ids2, (11,), 0, max_sequence_length, dtype=jnp.int32)
    out2 = jax.block_until_ready(trainable_position_encoding(pos_ids2, test_table))
    assert out2.shape == (11, d_model)
    assert jnp.allclose(out2, jnp.take(test_table, pos_ids2, axis=0))

    # Contiguous-ids fast path (the common case for position encodings).
    out3 = jax.block_until_ready(
        trainable_position_encoding_contiguous(test_table, start=3, length=seq_len))
    assert jnp.allclose(out3, test_table[3:3 + seq_len])

    out4 = jax.block_until_ready(
        trainable_position_encoding_contiguous(test_table, start=2, length=11))
    assert jnp.allclose(out4, test_table[2:13])

    print("KERNEL_OK")
</pallas_src>

<mosaic_0001>
module attributes {stable_mosaic.version = 11 : i64} {
  func.func @_gather_kernel(%arg0: i32, %arg1: memref<8xi32, #tpu.memory_space<smem>>, %arg2: memref<16x32xf32, #tpu.memory_space<any>>, %arg3: memref<8x32xf32, #tpu.memory_space<vmem>>, %arg4: memref<8x!tpu.dma_semaphore, #tpu.memory_space<semaphore_mem>>) attributes {dimension_semantics = [#tpu.dimension_semantics<parallel>], iteration_bounds = array<i64: 1>, scalar_prefetch = 1 : i64, scratch_operands = 1 : i64, tpu.core_type = #tpu.core_type<tc>, window_params = [{}, {transform_indices = @transform_1, window_bounds = array<i64: 8, 32>}]} {
    %c8_i32 = arith.constant 8 : i32
    %0 = arith.muli %arg0, %c8_i32 : i32
    %c0_i32 = arith.constant 0 : i32
    %c8_i32_0 = arith.constant 8 : i32
    %c0_i32_1 = arith.constant 0 : i32
    %1 = arith.cmpi eq, %c8_i32_0, %c0_i32_1 : i32
    %c1_i32 = arith.constant 1 : i32
    %2 = arith.select %1, %c1_i32, %c8_i32_0 : i32
    %3 = arith.remsi %c0_i32, %2 : i32
    %c0_i32_2 = arith.constant 0 : i32
    %4 = arith.cmpi ne, %3, %c0_i32_2 : i32
    %c0_i32_3 = arith.constant 0 : i32
    %5 = arith.cmpi slt, %3, %c0_i32_3 : i32
    %c0_i32_4 = arith.constant 0 : i32
    %6 = arith.cmpi slt, %2, %c0_i32_4 : i32
    %7 = arith.xori %5, %6 : i1
    %8 = arith.andi %7, %4 : i1
    %9 = arith.addi %3, %2 : i32
    %10 = arith.select %8, %9, %3 : i32
    %c8_i32_5 = arith.constant 8 : i32
    %11 = arith.cmpi sge, %c0_i32, %c8_i32_5 : i32
    %12 = arith.extui %11 : i1 to i32
    %c0_i32_6 = arith.constant 0 : i32
    %13 = arith.cmpi ne, %12, %c0_i32_6 : i32
    scf.if %13 {
      %c0_i32_122 = arith.constant 0 : i32
      %c0_i32_123 = arith.constant 0 : i32
      %193 = tpu.memref_slice %arg2[%c0_i32_122, %c0_i32_123] : memref<16x32xf32, #tpu.memory_space<any>> -> memref<1x32xf32, #tpu.memory_space<any>>
      %c0_i32_124 = arith.constant 0 : i32
      %c0_i32_125 = arith.constant 0 : i32
      %194 = tpu.memref_slice %arg3[%c0_i32_124, %c0_i32_125] : memref<8x32xf32, #tpu.memory_space<vmem>> -> memref<1x32xf32, #tpu.memory_space<vmem>>
      %195 = tpu.memref_slice %arg4[%10] : memref<8x!tpu.dma_semaphore, #tpu.memory_space<semaphore_mem>> -> memref<1x!tpu.dma_semaphore, #tpu.memory_space<semaphore_mem>>
      %196 = tpu.memref_squeeze %195 : memref<1x!tpu.dma_semaphore, #tpu.memory_space<semaphore_mem>> -> memref<!tpu.dma_semaphore, #tpu.memory_space<semaphore_mem>>
      tpu.wait_dma2 semaphore(%196 : memref<!tpu.dma_semaphore, #tpu.memory_space<semaphore_mem>>) src(%193 : memref<1x32xf32, #tpu.memory_space<any>>) dst(%194 : memref<1x32xf32, #tpu.memory_space<vmem>>)
    } else {
    }
    %14 = arith.addi %0, %c0_i32 : i32
    %15 = arith.index_cast %14 : i32 to index
    %16 = memref.load %arg1[%15] : memref<8xi32, #tpu.memory_space<smem>>
    %c0_i32_7 = arith.constant 0 : i32
    %17 = tpu.memref_slice %arg2[%16, %c0_i32_7] : memref<16x32xf32, #tpu.memory_space<any>> -> memref<1x32xf32, #tpu.memory_space<any>>
    %c0_i32_8 = arith.constant 0 : i32
    %18 = tpu.memref_slice %arg3[%c0_i32, %c0_i32_8] : memref<8x32xf32, #tpu.memory_space<vmem>> -> memref<1x32xf32, #tpu.memory_space<vmem>>
    %19 = tpu.memref_slice %arg4[%10] : memref<8x!tpu.dma_semaphore, #tpu.memory_space<semaphore_mem>> -> memref<1x!tpu.dma_semaphore, #tpu.memory_space<semaphore_mem>>
    %20 = tpu.memref_squeeze %19 : memref<1x!tpu.dma_semaphore, #tpu.memory_space<semaphore_mem>> -> memref<!tpu.dma_semaphore, #tpu.memory_space<semaphore_mem>>
    tpu.enqueue_dma source(%17 : memref<1x32xf32, #tpu.memory_space<any>>) target(%18 : memref<1x32xf32, #tpu.memory_space<vmem>>) target_semaphore(%20 : memref<!tpu.dma_semaphore, #tpu.memory_space<semaphore_mem>>)
    %c1_i32_9 = arith.constant 1 : i32
    %c8_i32_10 = arith.constant 8 : i32
    %c0_i32_11 = arith.constant 0 : i32
    %21 = arith.cmpi eq, %c8_i32_10, %c0_i32_11 : i32
    %c1_i32_12 = arith.constant 1 : i32
    %22 = arith.select %21, %c1_i32_12, %c8_i32_10 : i32
    %23 = arith.remsi %c1_i32_9, %22 : i32
    %c0_i32_13 = arith.constant 0 : i32
    %24 = arith.cmpi ne, %23, %c0_i32_13 : i32
    %c0_i32_14 = arith.constant 0 : i32
    %25 = arith.cmpi slt, %23, %c0_i32_14 : i32
    %c0_i32_15 = arith.constant 0 : i32
    %26 = arith.cmpi slt, %22, %c0_i32_15 : i32
    %27 = arith.xori %25, %26 : i1
    %28 = arith.andi %27, %24 : i1
    %29 = arith.addi %23, %22 : i32
    %30 = arith.select %28, %29, %23 : i32
    %c8_i32_16 = arith.constant 8 : i32
    %31 = arith.cmpi sge, %c1_i32_9, %c8_i32_16 : i32
    %32 = arith.extui %31 : i1 to i32
    %c0_i32_17 = arith.constant 0 : i32
    %33 = arith.cmpi ne, %32, %c0_i32_17 : i32
    scf.if %33 {
      %c0_i32_122 = arith.constant 0 : i32
      %c0_i32_123 = arith.constant 0 : i32
      %193 = tpu.memref_slice %arg2[%c0_i32_122, %c0_i32_123] : memref<16x32xf32, #tpu.memory_space<any>> -> memref<1x32xf32, #tpu.memory_space<any>>
      %c0_i32_124 = arith.constant 0 : i32
      %c0_i32_125 = arith.constant 0 : i32
      %194 = tpu.memref_slice %arg3[%c0_i32_124, %c0_i32_125] : memref<8x32xf32, #tpu.memory_space<vmem>> -> memref<1x32xf32, #tpu.memory_space<vmem>>
      %195 = tpu.memref_slice %arg4[%30] : memref<8x!tpu.dma_semaphore, #tpu.memory_space<semaphore_mem>> -> memref<1x!tpu.dma_semaphore, #tpu.memory_space<semaphore_mem>>
      %196 = tpu.memref_squeeze %195 : memref<1x!tpu.dma_semaphore, #tpu.memory_space<semaphore_mem>> -> memref<!tpu.dma_semaphore, #tpu.memory_space<semaphore_mem>>
      tpu.wait_dma2 semaphore(%196 : memref<!tpu.dma_semaphore, #tpu.memory_space<semaphore_mem>>) src(%193 : memref<1x32xf32, #tpu.memory_space<any>>) dst(%194 : memref<1x32xf32, #tpu.memory_space<vmem>>)
    } else {
    }
    %34 = arith.addi %0, %c1_i32_9 : i32
    %35 = arith.index_cast %34 : i32 to index
    %36 = memref.load %arg1[%35] : memref<8xi32, #tpu.memory_space<smem>>
    %c0_i32_18 = arith.constant 0 : i32
    %37 = tpu.memref_slice %arg2[%36, %c0_i32_18] : memref<16x32xf32, #tpu.memory_space<any>> -> memref<1x32xf32, #tpu.memory_space<any>>
    %c0_i32_19 = arith.constant 0 : i32
    %38 = tpu.memref_slice %arg3[%c1_i32_9, %c0_i32_19] : memref<8x32xf32, #tpu.memory_space<vmem>> -> memref<1x32xf32, #tpu.memory_space<vmem>>
    %39 = tpu.memref_slice %arg4[%30] : memref<8x!tpu.dma_semaphore, #tpu.memory_space<semaphore_mem>> -> memref<1x!tpu.dma_semaphore, #tpu.memory_space<semaphore_mem>>
    %40 = tpu.memref_squeeze %39 : memref<1x!tpu.dma_semaphore, #tpu.memory_space<semaphore_mem>> -> memref<!tpu.dma_semaphore, #tpu.memory_space<semaphore_mem>>
    tpu.enqueue_dma source(%37 : memref<1x32xf32, #tpu.memory_space<any>>) target(%38 : memref<1x32xf32, #tpu.memory_space<vmem>>) target_semaphore(%40 : memref<!tpu.dma_semaphore, #tpu.memory_space<semaphore_mem>>)
    %c2_i32 = arith.constant 2 : i32
    %c8_i32_20 = arith.constant 8 : i32
    %c0_i32_21 = arith.constant 0 : i32
    %41 = arith.cmpi eq, %c8_i32_20, %c0_i32_21 : i32
    %c1_i32_22 = arith.constant 1 : i32
    %42 = arith.select %41, %c1_i32_22, %c8_i32_20 : i32
    %43 = arith.remsi %c2_i32, %42 : i32
    %c0_i32_23 = arith.constant 0 : i32
    %44 = arith.cmpi ne, %43, %c0_i32_23 : i32
    %c0_i32_24 = arith.constant 0 : i32
    %45 = arith.cmpi slt, %43, %c0_i32_24 : i32
    %c0_i32_25 = arith.constant 0 : i32
    %46 = arith.cmpi slt, %42, %c0_i32_25 : i32
    %47 = arith.xori %45, %46 : i1
    %48 = arith.andi %47, %44 : i1
    %49 = arith.addi %43, %42 : i32
    %50 = arith.select %48, %49, %43 : i32
    %c8_i32_26 = arith.constant 8 : i32
    %51 = arith.cmpi sge, %c2_i32, %c8_i32_26 : i32
    %52 = arith.extui %51 : i1 to i32
    %c0_i32_27 = arith.constant 0 : i32
    %53 = arith.cmpi ne, %52, %c0_i32_27 : i32
    scf.if %53 {
      %c0_i32_122 = arith.constant 0 : i32
      %c0_i32_123 = arith.constant 0 : i32
      %193 = tpu.memref_slice %arg2[%c0_i32_122, %c0_i32_123] : memref<16x32xf32, #tpu.memory_space<any>> -> memref<1x32xf32, #tpu.memory_space<any>>
      %c0_i32_124 = arith.constant 0 : i32
      %c0_i32_125 = arith.constant 0 : i32
      %194 = tpu.memref_slice %arg3[%c0_i32_124, %c0_i32_125] : memref<8x32xf32, #tpu.memory_space<vmem>> -> memref<1x32xf32, #tpu.memory_space<vmem>>
      %195 = tpu.memref_slice %arg4[%50] : memref<8x!tpu.dma_semaphore, #tpu.memory_space<semaphore_mem>> -> memref<1x!tpu.dma_semaphore, #tpu.memory_space<semaphore_mem>>
      %196 = tpu.memref_squeeze %195 : memref<1x!tpu.dma_semaphore, #tpu.memory_space<semaphore_mem>> -> memref<!tpu.dma_semaphore, #tpu.memory_space<semaphore_mem>>
      tpu.wait_dma2 semaphore(%196 : memref<!tpu.dma_semaphore, #tpu.memory_space<semaphore_mem>>) src(%193 : memref<1x32xf32, #tpu.memory_space<any>>) dst(%194 : memref<1x32xf32, #tpu.memory_space<vmem>>)
    } else {
    }
    %54 = arith.addi %0, %c2_i32 : i32
    %55 = arith.index_cast %54 : i32 to index
    %56 = memref.load %arg1[%55] : memref<8xi32, #tpu.memory_space<smem>>
    %c0_i32_28 = arith.constant 0 : i32
    %57 = tpu.memref_slice %arg2[%56, %c0_i32_28] : memref<16x32xf32, #tpu.memory_space<any>> -> memref<1x32xf32, #tpu.memory_space<any>>
    %c0_i32_29 = arith.constant 0 : i32
    %58 = tpu.memref_slice %arg3[%c2_i32, %c0_i32_29] : memref<8x32xf32, #tpu.memory_space<vmem>> -> memref<1x32xf32, #tpu.memory_space<vmem>>
    %59 = tpu.memref_slice %arg4[%50] : memref<8x!tpu.dma_semaphore, #tpu.memory_space<semaphore_mem>> -> memref<1x!tpu.dma_semaphore, #tpu.memory_space<semaphore_mem>>
    %60 = tpu.memref_squeeze %59 : memref<1x!tpu.dma_semaphore, #tpu.memory_space<semaphore_mem>> -> memref<!tpu.dma_semaphore, #tpu.memory_space<semaphore_mem>>
    tpu.enqueue_dma source(%57 : memref<1x32xf32, #tpu.memory_space<any>>) target(%58 : memref<1x32xf32, #tpu.memory_space<vmem>>) target_semaphore(%60 : memref<!tpu.dma_semaphore, #tpu.memory_space<semaphore_mem>>)
    %c3_i32 = arith.constant 3 : i32
    %c8_i32_30 = arith.constant 8 : i32
    %c0_i32_31 = arith.constant 0 : i32
    %61 = arith.cmpi eq, %c8_i32_30, %c0_i32_31 : i32
    %c1_i32_32 = arith.constant 1 : i32
    %62 = arith.select %61, %c1_i32_32, %c8_i32_30 : i32
    %63 = arith.remsi %c3_i32, %62 : i32
    %c0_i32_33 = arith.constant 0 : i32
    %64 = arith.cmpi ne, %63, %c0_i32_33 : i32
    %c0_i32_34 = arith.constant 0 : i32
    %65 = arith.cmpi slt, %63, %c0_i32_34 : i32
    %c0_i32_35 = arith.constant 0 : i32
    %66 = arith.cmpi slt, %62, %c0_i32_35 : i32
    %67 = arith.xori %65, %66 : i1
    %68 = arith.andi %67, %64 : i1
    %69 = arith.addi %63, %62 : i32
    %70 = arith.select %68, %69, %63 : i32
    %c8_i32_36 = arith.constant 8 : i32
    %71 = arith.cmpi sge, %c3_i32, %c8_i32_36 : i32
    %72 = arith.extui %71 : i1 to i32
    %c0_i32_37 = arith.constant 0 : i32
    %73 = arith.cmpi ne, %72, %c0_i32_37 : i32
    scf.if %73 {
      %c0_i32_122 = arith.constant 0 : i32
      %c0_i32_123 = arith.constant 0 : i32
      %193 = tpu.memref_slice %arg2[%c0_i32_122, %c0_i32_123] : memref<16x32xf32, #tpu.memory_space<any>> -> memref<1x32xf32, #tpu.memory_space<any>>
      %c0_i32_124 = arith.constant 0 : i32
      %c0_i32_125 = arith.constant 0 : i32
      %194 = tpu.memref_slice %arg3[%c0_i32_124, %c0_i32_125] : memref<8x32xf32, #tpu.memory_space<vmem>> -> memref<1x32xf32, #tpu.memory_space<vmem>>
      %195 = tpu.memref_slice %arg4[%70] : memref<8x!tpu.dma_semaphore, #tpu.memory_space<semaphore_mem>> -> memref<1x!tpu.dma_semaphore, #tpu.memory_space<semaphore_mem>>
      %196 = tpu.memref_squeeze %195 : memref<1x!tpu.dma_semaphore, #tpu.memory_space<semaphore_mem>> -> memref<!tpu.dma_semaphore, #tpu.memory_space<semaphore_mem>>
      tpu.wait_dma2 semaphore(%196 : memref<!tpu.dma_semaphore, #tpu.memory_space<semaphore_mem>>) src(%193 : memref<1x32xf32, #tpu.memory_space<any>>) dst(%194 : memref<1x32xf32, #tpu.memory_space<vmem>>)
    } else {
    }
    %74 = arith.addi %0, %c3_i32 : i32
    %75 = arith.index_cast %74 : i32 to index
    %76 = memref.load %arg1[%75] : memref<8xi32, #tpu.memory_space<smem>>
    %c0_i32_38 = arith.constant 0 : i32
    %77 = tpu.memref_slice %arg2[%76, %c0_i32_38] : memref<16x32xf32, #tpu.memory_space<any>> -> memref<1x32xf32, #tpu.memory_space<any>>
    %c0_i32_39 = arith.constant 0 : i32
    %78 = tpu.memref_slice %arg3[%c3_i32, %c0_i32_39] : memref<8x32xf32, #tpu.memory_space<vmem>> -> memref<1x32xf32, #tpu.memory_space<vmem>>
    %79 = tpu.memref_slice %arg4[%70] : memref<8x!tpu.dma_semaphore, #tpu.memory_space<semaphore_mem>> -> memref<1x!tpu.dma_semaphore, #tpu.memory_space<semaphore_mem>>
    %80 = tpu.memref_squeeze %79 : memref<1x!tpu.dma_semaphore, #tpu.memory_space<semaphore_mem>> -> memref<!tpu.dma_semaphore, #tpu.memory_space<semaphore_mem>>
    tpu.enqueue_dma source(%77 : memref<1x32xf32, #tpu.memory_space<any>>) target(%78 : memref<1x32xf32, #tpu.memory_space<vmem>>) target_semaphore(%80 : memref<!tpu.dma_semaphore, #tpu.memory_space<semaphore_mem>>)
    %c4_i32 = arith.constant 4 : i32
    %c8_i32_40 = arith.constant 8 : i32
    %c0_i32_41 = arith.constant 0 : i32
    %81 = arith.cmpi eq, %c8_i32_40, %c0_i32_41 : i32
    %c1_i32_42 = arith.constant 1 : i32
    %82 = arith.select %81, %c1_i32_42, %c8_i32_40 : i32
    %83 = arith.remsi %c4_i32, %82 : i32
    %c0_i32_43 = arith.constant 0 : i32
    %84 = arith.cmpi ne, %83, %c0_i32_43 : i32
    %c0_i32_44 = arith.constant 0 : i32
    %85 = arith.cmpi slt, %83, %c0_i32_44 : i32
    %c0_i32_45 = arith.constant 0 : i32
    %86 = arith.cmpi slt, %82, %c0_i32_45 : i32
    %87 = arith.xori %85, %86 : i1
    %88 = arith.andi %87, %84 : i1
    %89 = arith.addi %83, %82 : i32
    %90 = arith.select %88, %89, %83 : i32
    %c8_i32_46 = arith.constant 8 : i32
    %91 = arith.cmpi sge, %c4_i32, %c8_i32_46 : i32
    %92 = arith.extui %91 : i1 to i32
    %c0_i32_47 = arith.constant 0 : i32
    %93 = arith.cmpi ne, %92, %c0_i32_47 : i32
    scf.if %93 {
      %c0_i32_122 = arith.constant 0 : i32
      %c0_i32_123 = arith.constant 0 : i32
      %193 = tpu.memref_slice %arg2[%c0_i32_122, %c0_i32_123] : memref<16x32xf32, #tpu.memory_space<any>> -> memref<1x32xf32, #tpu.memory_space<any>>
      %c0_i32_124 = arith.constant 0 : i32
      %c0_i32_125 = arith.constant 0 : i32
      %194 = tpu.memref_slice %arg3[%c0_i32_124, %c0_i32_125] : memref<8x32xf32, #tpu.memory_space<vmem>> -> memref<1x32xf32, #tpu.memory_space<vmem>>
      %195 = tpu.memref_slice %arg4[%90] : memref<8x!tpu.dma_semaphore, #tpu.memory_space<semaphore_mem>> -> memref<1x!tpu.dma_semaphore, #tpu.memory_space<semaphore_mem>>
      %196 = tpu.memref_squeeze %195 : memref<1x!tpu.dma_semaphore, #tpu.memory_space<semaphore_mem>> -> memref<!tpu.dma_semaphore, #tpu.memory_space<semaphore_mem>>
      tpu.wait_dma2 semaphore(%196 : memref<!tpu.dma_semaphore, #tpu.memory_space<semaphore_mem>>) src(%193 : memref<1x32xf32, #tpu.memory_space<any>>) dst(%194 : memref<1x32xf32, #tpu.memory_space<vmem>>)
    } else {
    }
    %94 = arith.addi %0, %c4_i32 : i32
    %95 = arith.index_cast %94 : i32 to index
    %96 = memref.load %arg1[%95] : memref<8xi32, #tpu.memory_space<smem>>
    %c0_i32_48 = arith.constant 0 : i32
    %97 = tpu.memref_slice %arg2[%96, %c0_i32_48] : memref<16x32xf32, #tpu.memory_space<any>> -> memref<1x32xf32, #tpu.memory_space<any>>
    %c0_i32_49 = arith.constant 0 : i32
    %98 = tpu.memref_slice %arg3[%c4_i32, %c0_i32_49] : memref<8x32xf32, #tpu.memory_space<vmem>> -> memref<1x32xf32, #tpu.memory_space<vmem>>
    %99 = tpu.memref_slice %arg4[%90] : memref<8x!tpu.dma_semaphore, #tpu.memory_space<semaphore_mem>> -> memref<1x!tpu.dma_semaphore, #tpu.memory_space<semaphore_mem>>
    %100 = tpu.memref_squeeze %99 : memref<1x!tpu.dma_semaphore, #tpu.memory_space<semaphore_mem>> -> memref<!tpu.dma_semaphore, #tpu.memory_space<semaphore_mem>>
    tpu.enqueue_dma source(%97 : memref<1x32xf32, #tpu.memory_space<any>>) target(%98 : memref<1x32xf32, #tpu.memory_space<vmem>>) target_semaphore(%100 : memref<!tpu.dma_semaphore, #tpu.memory_space<semaphore_mem>>)
    %c5_i32 = arith.constant 5 : i32
    %c8_i32_50 = arith.constant 8 : i32
    %c0_i32_51 = arith.constant 0 : i32
    %101 = arith.cmpi eq, %c8_i32_50, %c0_i32_51 : i32
    %c1_i32_52 = arith.constant 1 : i32
    %102 = arith.select %101, %c1_i32_52, %c8_i32_50 : i32
    %103 = arith.remsi %c5_i32, %102 : i32
    %c0_i32_53 = arith.constant 0 : i32
    %104 = arith.cmpi ne, %103, %c0_i32_53 : i32
    %c0_i32_54 = arith.constant 0 : i32
    %105 = arith.cmpi slt, %103, %c0_i32_54 : i32
    %c0_i32_55 = arith.constant 0 : i32
    %106 = arith.cmpi slt, %102, %c0_i32_55 : i32
    %107 = arith.xori %105, %106 : i1
    %108 = arith.andi %107, %104 : i1
    %109 = arith.addi %103, %102 : i32
    %110 = arith.select %108, %109, %103 : i32
    %c8_i32_56 = arith.constant 8 : i32
    %111 = arith.cmpi sge, %c5_i32, %c8_i32_56 : i32
    %112 = arith.extui %111 : i1 to i32
    %c0_i32_57 = arith.constant 0 : i32
    %113 = arith.cmpi ne, %112, %c0_i32_57 : i32
    scf.if %113 {
      %c0_i32_122 = arith.constant 0 : i32
      %c0_i32_123 = arith.constant 0 : i32
      %193 = tpu.memref_slice %arg2[%c0_i32_122, %c0_i32_123] : memref<16x32xf32, #tpu.memory_space<any>> -> memref<1x32xf32, #tpu.memory_space<any>>
      %c0_i32_124 = arith.constant 0 : i32
      %c0_i32_125 = arith.constant 0 : i32
      %194 = tpu.memref_slice %arg3[%c0_i32_124, %c0_i32_125] : memref<8x32xf32, #tpu.memory_space<vmem>> -> memref<1x32xf32, #tpu.memory_space<vmem>>
      %195 = tpu.memref_slice %arg4[%110] : memref<8x!tpu.dma_semaphore, #tpu.memory_space<semaphore_mem>> -> memref<1x!tpu.dma_semaphore, #tpu.memory_space<semaphore_mem>>
      %196 = tpu.memref_squeeze %195 : memref<1x!tpu.dma_semaphore, #tpu.memory_space<semaphore_mem>> -> memref<!tpu.dma_semaphore, #tpu.memory_space<semaphore_mem>>
      tpu.wait_dma2 semaphore(%196 : memref<!tpu.dma_semaphore, #tpu.memory_space<semaphore_mem>>) src(%193 : memref<1x32xf32, #tpu.memory_space<any>>) dst(%194 : memref<1x32xf32, #tpu.memory_space<vmem>>)
    } else {
    }
    %114 = arith.addi %0, %c5_i32 : i32
    %115 = arith.index_cast %114 : i32 to index
    %116 = memref.load %arg1[%115] : memref<8xi32, #tpu.memory_space<smem>>
    %c0_i32_58 = arith.constant 0 : i32
    %117 = tpu.memref_slice %arg2[%116, %c0_i32_58] : memref<16x32xf32, #tpu.memory_space<any>> -> memref<1x32xf32, #tpu.memory_space<any>>
    %c0_i32_59 = arith.constant 0 : i32
    %118 = tpu.memref_slice %arg3[%c5_i32, %c0_i32_59] : memref<8x32xf32, #tpu.memory_space<vmem>> -> memref<1x32xf32, #tpu.memory_space<vmem>>
    %119 = tpu.memref_slice %arg4[%110] : memref<8x!tpu.dma_semaphore, #tpu.memory_space<semaphore_mem>> -> memref<1x!tpu.dma_semaphore, #tpu.memory_space<semaphore_mem>>
    %120 = tpu.memref_squeeze %119 : memref<1x!tpu.dma_semaphore, #tpu.memory_space<semaphore_mem>> -> memref<!tpu.dma_semaphore, #tpu.memory_space<semaphore_mem>>
    tpu.enqueue_dma source(%117 : memref<1x32xf32, #tpu.memory_space<any>>) target(%118 : memref<1x32xf32, #tpu.memory_space<vmem>>) target_semaphore(%120 : memref<!tpu.dma_semaphore, #tpu.memory_space<semaphore_mem>>)
    %c6_i32 = arith.constant 6 : i32
    %c8_i32_60 = arith.constant 8 : i32
    %c0_i32_61 = arith.constant 0 : i32
    %121 = arith.cmpi eq, %c8_i32_60, %c0_i32_61 : i32
    %c1_i32_62 = arith.constant 1 : i32
    %122 = arith.select %121, %c1_i32_62, %c8_i32_60 : i32
    %123 = arith.remsi %c6_i32, %122 : i32
    %c0_i32_63 = arith.constant 0 : i32
    %124 = arith.cmpi ne, %123, %c0_i32_63 : i32
    %c0_i32_64 = arith.constant 0 : i32
    %125 = arith.cmpi slt, %123, %c0_i32_64 : i32
    %c0_i32_65 = arith.constant 0 : i32
    %126 = arith.cmpi slt, %122, %c0_i32_65 : i32
    %127 = arith.xori %125, %126 : i1
    %128 = arith.andi %127, %124 : i1
    %129 = arith.addi %123, %122 : i32
    %130 = arith.select %128, %129, %123 : i32
    %c8_i32_66 = arith.constant 8 : i32
    %131 = arith.cmpi sge, %c6_i32, %c8_i32_66 : i32
    %132 = arith.extui %131 : i1 to i32
    %c0_i32_67 = arith.constant 0 : i32
    %133 = arith.cmpi ne, %132, %c0_i32_67 : i32
    scf.if %133 {
      %c0_i32_122 = arith.constant 0 : i32
      %c0_i32_123 = arith.constant 0 : i32
      %193 = tpu.memref_slice %arg2[%c0_i32_122, %c0_i32_123] : memref<16x32xf32, #tpu.memory_space<any>> -> memref<1x32xf32, #tpu.memory_space<any>>
      %c0_i32_124 = arith.constant 0 : i32
      %c0_i32_125 = arith.constant 0 : i32
      %194 = tpu.memref_slice %arg3[%c0_i32_124, %c0_i32_125] : memref<8x32xf32, #tpu.memory_space<vmem>> -> memref<1x32xf32, #tpu.memory_space<vmem>>
      %195 = tpu.memref_slice %arg4[%130] : memref<8x!tpu.dma_semaphore, #tpu.memory_space<semaphore_mem>> -> memref<1x!tpu.dma_semaphore, #tpu.memory_space<semaphore_mem>>
      %196 = tpu.memref_squeeze %195 : memref<1x!tpu.dma_semaphore, #tpu.memory_space<semaphore_mem>> -> memref<!tpu.dma_semaphore, #tpu.memory_space<semaphore_mem>>
      tpu.wait_dma2 semaphore(%196 : memref<!tpu.dma_semaphore, #tpu.memory_space<semaphore_mem>>) src(%193 : memref<1x32xf32, #tpu.memory_space<any>>) dst(%194 : memref<1x32xf32, #tpu.memory_space<vmem>>)
    } else {
    }
    %134 = arith.addi %0, %c6_i32 : i32
    %135 = arith.index_cast %134 : i32 to index
    %136 = memref.load %arg1[%135] : memref<8xi32, #tpu.memory_space<smem>>
    %c0_i32_68 = arith.constant 0 : i32
    %137 = tpu.memref_slice %arg2[%136, %c0_i32_68] : memref<16x32xf32, #tpu.memory_space<any>> -> memref<1x32xf32, #tpu.memory_space<any>>
    %c0_i32_69 = arith.constant 0 : i32
    %138 = tpu.memref_slice %arg3[%c6_i32, %c0_i32_69] : memref<8x32xf32, #tpu.memory_space<vmem>> -> memref<1x32xf32, #tpu.memory_space<vmem>>
    %139 = tpu.memref_slice %arg4[%130] : memref<8x!tpu.dma_semaphore, #tpu.memory_space<semaphore_mem>> -> memref<1x!tpu.dma_semaphore, #tpu.memory_space<semaphore_mem>>
    %140 = tpu.memref_squeeze %139 : memref<1x!tpu.dma_semaphore, #tpu.memory_space<semaphore_mem>> -> memref<!tpu.dma_semaphore, #tpu.memory_space<semaphore_mem>>
    tpu.enqueue_dma source(%137 : memref<1x32xf32, #tpu.memory_space<any>>) target(%138 : memref<1x32xf32, #tpu.memory_space<vmem>>) target_semaphore(%140 : memref<!tpu.dma_semaphore, #tpu.memory_space<semaphore_mem>>)
    %c7_i32 = arith.constant 7 : i32
    %c8_i32_70 = arith.constant 8 : i32
    %c0_i32_71 = arith.constant 0 : i32
    %141 = arith.cmpi eq, %c8_i32_70, %c0_i32_71 : i32
    %c1_i32_72 = arith.constant 1 : i32
    %142 = arith.select %141, %c1_i32_72, %c8_i32_70 : i32
    %143 = arith.remsi %c7_i32, %142 : i32
    %c0_i32_73 = arith.constant 0 : i32
    %144 = arith.cmpi ne, %143, %c0_i32_73 : i32
    %c0_i32_74 = arith.constant 0 : i32
    %145 = arith.cmpi slt, %143, %c0_i32_74 : i32
    %c0_i32_75 = arith.constant 0 : i32
    %146 = arith.cmpi slt, %142, %c0_i32_75 : i32
    %147 = arith.xori %145, %146 : i1
    %148 = arith.andi %147, %144 : i1
    %149 = arith.addi %143, %142 : i32
    %150 = arith.select %148, %149, %143 : i32
    %c8_i32_76 = arith.constant 8 : i32
    %151 = arith.cmpi sge, %c7_i32, %c8_i32_76 : i32
    %152 = arith.extui %151 : i1 to i32
    %c0_i32_77 = arith.constant 0 : i32
    %153 = arith.cmpi ne, %152, %c0_i32_77 : i32
    scf.if %153 {
      %c0_i32_122 = arith.constant 0 : i32
      %c0_i32_123 = arith.constant 0 : i32
      %193 = tpu.memref_slice %arg2[%c0_i32_122, %c0_i32_123] : memref<16x32xf32, #tpu.memory_space<any>> -> memref<1x32xf32, #tpu.memory_space<any>>
      %c0_i32_124 = arith.constant 0 : i32
      %c0_i32_125 = arith.constant 0 : i32
      %194 = tpu.memref_slice %arg3[%c0_i32_124, %c0_i32_125] : memref<8x32xf32, #tpu.memory_space<vmem>> -> memref<1x32xf32, #tpu.memory_space<vmem>>
      %195 = tpu.memref_slice %arg4[%150] : memref<8x!tpu.dma_semaphore, #tpu.memory_space<semaphore_mem>> -> memref<1x!tpu.dma_semaphore, #tpu.memory_space<semaphore_mem>>
      %196 = tpu.memref_squeeze %195 : memref<1x!tpu.dma_semaphore, #tpu.memory_space<semaphore_mem>> -> memref<!tpu.dma_semaphore, #tpu.memory_space<semaphore_mem>>
      tpu.wait_dma2 semaphore(%196 : memref<!tpu.dma_semaphore, #tpu.memory_space<semaphore_mem>>) src(%193 : memref<1x32xf32, #tpu.memory_space<any>>) dst(%194 : memref<1x32xf32, #tpu.memory_space<vmem>>)
    } else {
    }
    %154 = arith.addi %0, %c7_i32 : i32
    %155 = arith.index_cast %154 : i32 to index
    %156 = memref.load %arg1[%155] : memref<8xi32, #tpu.memory_space<smem>>
    %c0_i32_78 = arith.constant 0 : i32
    %157 = tpu.memref_slice %arg2[%156, %c0_i32_78] : memref<16x32xf32, #tpu.memory_space<any>> -> memref<1x32xf32, #tpu.memory_space<any>>
    %c0_i32_79 = arith.constant 0 : i32
    %158 = tpu.memref_slice %arg3[%c7_i32, %c0_i32_79] : memref<8x32xf32, #tpu.memory_space<vmem>> -> memref<1x32xf32, #tpu.memory_space<vmem>>
    %159 = tpu.memref_slice %arg4[%150] : memref<8x!tpu.dma_semaphore, #tpu.memory_space<semaphore_mem>> -> memref<1x!tpu.dma_semaphore, #tpu.memory_space<semaphore_mem>>
    %160 = tpu.memref_squeeze %159 : memref<1x!tpu.dma_semaphore, #tpu.memory_space<semaphore_mem>> -> memref<!tpu.dma_semaphore, #tpu.memory_space<semaphore_mem>>
    tpu.enqueue_dma source(%157 : memref<1x32xf32, #tpu.memory_space<any>>) target(%158 : memref<1x32xf32, #tpu.memory_space<vmem>>) target_semaphore(%160 : memref<!tpu.dma_semaphore, #tpu.memory_space<semaphore_mem>>)
    %c8_i32_80 = arith.constant 8 : i32
    %c0_i32_81 = arith.constant 0 : i32
    %c0_i32_82 = arith.constant 0 : i32
    %c0_i32_83 = arith.constant 0 : i32
    %161 = tpu.memref_slice %arg2[%c0_i32_82, %c0_i32_83] : memref<16x32xf32, #tpu.memory_space<any>> -> memref<1x32xf32, #tpu.memory_space<any>>
    %c0_i32_84 = arith.constant 0 : i32
    %c0_i32_85 = arith.constant 0 : i32
    %162 = tpu.memref_slice %arg3[%c0_i32_84, %c0_i32_85] : memref<8x32xf32, #tpu.memory_space<vmem>> -> memref<1x32xf32, #tpu.memory_space<vmem>>
    %163 = tpu.memref_slice %arg4[%c0_i32_81] : memref<8x!tpu.dma_semaphore, #tpu.memory_space<semaphore_mem>> -> memref<1x!tpu.dma_semaphore, #tpu.memory_space<semaphore_mem>>
    %164 = tpu.memref_squeeze %163 : memref<1x!tpu.dma_semaphore, #tpu.memory_space<semaphore_mem>> -> memref<!tpu.dma_semaphore, #tpu.memory_space<semaphore_mem>>
    tpu.wait_dma2 semaphore(%164 : memref<!tpu.dma_semaphore, #tpu.memory_space<semaphore_mem>>) src(%161 : memref<1x32xf32, #tpu.memory_space<any>>) dst(%162 : memref<1x32xf32, #tpu.memory_space<vmem>>)
    %c1_i32_86 = arith.constant 1 : i32
    %c0_i32_87 = arith.constant 0 : i32
    %c0_i32_88 = arith.constant 0 : i32
    %165 = tpu.memref_slice %arg2[%c0_i32_87, %c0_i32_88] : memref<16x32xf32, #tpu.memory_space<any>> -> memref<1x32xf32, #tpu.memory_space<any>>
    %c0_i32_89 = arith.constant 0 : i32
    %c0_i32_90 = arith.constant 0 : i32
    %166 = tpu.memref_slice %arg3[%c0_i32_89, %c0_i32_90] : memref<8x32xf32, #tpu.memory_space<vmem>> -> memref<1x32xf32, #tpu.memory_space<vmem>>
    %167 = tpu.memref_slice %arg4[%c1_i32_86] : memref<8x!tpu.dma_semaphore, #tpu.memory_space<semaphore_mem>> -> memref<1x!tpu.dma_semaphore, #tpu.memory_space<semaphore_mem>>
    %168 = tpu.memref_squeeze %167 : memref<1x!tpu.dma_semaphore, #tpu.memory_space<semaphore_mem>> -> memref<!tpu.dma_semaphore, #tpu.memory_space<semaphore_mem>>
    tpu.wait_dma2 semaphore(%168 : memref<!tpu.dma_semaphore, #tpu.memory_space<semaphore_mem>>) src(%165 : memref<1x32xf32, #tpu.memory_space<any>>) dst(%166 : memref<1x32xf32, #tpu.memory_space<vmem>>)
    %c2_i32_91 = arith.constant 2 : i32
    %c0_i32_92 = arith.constant 0 : i32
    %c0_i32_93 = arith.constant 0 : i32
    %169 = tpu.memref_slice %arg2[%c0_i32_92, %c0_i32_93] : memref<16x32xf32, #tpu.memory_space<any>> -> memref<1x32xf32, #tpu.memory_space<any>>
    %c0_i32_94 = arith.constant 0 : i32
    %c0_i32_95 = arith.constant 0 : i32
    %170 = tpu.memref_slice %arg3[%c0_i32_94, %c0_i32_95] : memref<8x32xf32, #tpu.memory_space<vmem>> -> memref<1x32xf32, #tpu.memory_space<vmem>>
    %171 = tpu.memref_slice %arg4[%c2_i32_91] : memref<8x!tpu.dma_semaphore, #tpu.memory_space<semaphore_mem>> -> memref<1x!tpu.dma_semaphore, #tpu.memory_space<semaphore_mem>>
    %172 = tpu.memref_squeeze %171 : memref<1x!tpu.dma_semaphore, #tpu.memory_space<semaphore_mem>> -> memref<!tpu.dma_semaphore, #tpu.memory_space<semaphore_mem>>
    tpu.wait_dma2 semaphore(%172 : memref<!tpu.dma_semaphore, #tpu.memory_space<semaphore_mem>>) src(%169 : memref<1x32xf32, #tpu.memory_space<any>>) dst(%170 : memref<1x32xf32, #tpu.memory_space<vmem>>)
    %c3_i32_96 = arith.constant 3 : i32
    %c0_i32_97 = arith.constant 0 : i32
    %c0_i32_98 = arith.constant 0 : i32
    %173 = tpu.memref_slice %arg2[%c0_i32_97, %c0_i32_98] : memref<16x32xf32, #tpu.memory_space<any>> -> memref<1x32xf32, #tpu.memory_space<any>>
    %c0_i32_99 = arith.constant 0 : i32
    %c0_i32_100 = arith.constant 0 : i32
    %174 = tpu.memref_slice %arg3[%c0_i32_99, %c0_i32_100] : memref<8x32xf32, #tpu.memory_space<vmem>> -> memref<1x32xf32, #tpu.memory_space<vmem>>
    %175 = tpu.memref_slice %arg4[%c3_i32_96] : memref<8x!tpu.dma_semaphore, #tpu.memory_space<semaphore_mem>> -> memref<1x!tpu.dma_semaphore, #tpu.memory_space<semaphore_mem>>
    %176 = tpu.memref_squeeze %175 : memref<1x!tpu.dma_semaphore, #tpu.memory_space<semaphore_mem>> -> memref<!tpu.dma_semaphore, #tpu.memory_space<semaphore_mem>>
    tpu.wait_dma2 semaphore(%176 : memref<!tpu.dma_semaphore, #tpu.memory_space<semaphore_mem>>) src(%173 : memref<1x32xf32, #tpu.memory_space<any>>) dst(%174 : memref<1x32xf32, #tpu.memory_space<vmem>>)
    %c4_i32_101 = arith.constant 4 : i32
    %c0_i32_102 = arith.constant 0 : i32
    %c0_i32_103 = arith.constant 0 : i32
    %177 = tpu.memref_slice %arg2[%c0_i32_102, %c0_i32_103] : memref<16x32xf32, #tpu.memory_space<any>> -> memref<1x32xf32, #tpu.memory_space<any>>
    %c0_i32_104 = arith.constant 0 : i32
    %c0_i32_105 = arith.constant 0 : i32
    %178 = tpu.memref_slice %arg3[%c0_i32_104, %c0_i32_105] : memref<8x32xf32, #tpu.memory_space<vmem>> -> memref<1x32xf32, #tpu.memory_space<vmem>>
    %179 = tpu.memref_slice %arg4[%c4_i32_101] : memref<8x!tpu.dma_semaphore, #tpu.memory_space<semaphore_mem>> -> memref<1x!tpu.dma_semaphore, #tpu.memory_space<semaphore_mem>>
    %180 = tpu.memref_squeeze %179 : memref<1x!tpu.dma_semaphore, #tpu.memory_space<semaphore_mem>> -> memref<!tpu.dma_semaphore, #tpu.memory_space<semaphore_mem>>
    tpu.wait_dma2 semaphore(%180 : memref<!tpu.dma_semaphore, #tpu.memory_space<semaphore_mem>>) src(%177 : memref<1x32xf32, #tpu.memory_space<any>>) dst(%178 : memref<1x32xf32, #tpu.memory_space<vmem>>)
    %c5_i32_106 = arith.constant 5 : i32
    %c0_i32_107 = arith.constant 0 : i32
    %c0_i32_108 = arith.constant 0 : i32
    %181 = tpu.memref_slice %arg2[%c0_i32_107, %c0_i32_108] : memref<16x32xf32, #tpu.memory_space<any>> -> memref<1x32xf32, #tpu.memory_space<any>>
    %c0_i32_109 = arith.constant 0 : i32
    %c0_i32_110 = arith.constant 0 : i32
    %182 = tpu.memref_slice %arg3[%c0_i32_109, %c0_i32_110] : memref<8x32xf32, #tpu.memory_space<vmem>> -> memref<1x32xf32, #tpu.memory_space<vmem>>
    %183 = tpu.memref_slice %arg4[%c5_i32_106] : memref<8x!tpu.dma_semaphore, #tpu.memory_space<semaphore_mem>> -> memref<1x!tpu.dma_semaphore, #tpu.memory_space<semaphore_mem>>
    %184 = tpu.memref_squeeze %183 : memref<1x!tpu.dma_semaphore, #tpu.memory_space<semaphore_mem>> -> memref<!tpu.dma_semaphore, #tpu.memory_space<semaphore_mem>>
    tpu.wait_dma2 semaphore(%184 : memref<!tpu.dma_semaphore, #tpu.memory_space<semaphore_mem>>) src(%181 : memref<1x32xf32, #tpu.memory_space<any>>) dst(%182 : memref<1x32xf32, #tpu.memory_space<vmem>>)
    %c6_i32_111 = arith.constant 6 : i32
    %c0_i32_112 = arith.constant 0 : i32
    %c0_i32_113 = arith.constant 0 : i32
    %185 = tpu.memref_slice %arg2[%c0_i32_112, %c0_i32_113] : memref<16x32xf32, #tpu.memory_space<any>> -> memref<1x32xf32, #tpu.memory_space<any>>
    %c0_i32_114 = arith.constant 0 : i32
    %c0_i32_115 = arith.constant 0 : i32
    %186 = tpu.memref_slice %arg3[%c0_i32_114, %c0_i32_115] : memref<8x32xf32, #tpu.memory_space<vmem>> -> memref<1x32xf32, #tpu.memory_space<vmem>>
    %187 = tpu.memref_slice %arg4[%c6_i32_111] : memref<8x!tpu.dma_semaphore, #tpu.memory_space<semaphore_mem>> -> memref<1x!tpu.dma_semaphore, #tpu.memory_space<semaphore_mem>>
    %188 = tpu.memref_squeeze %187 : memref<1x!tpu.dma_semaphore, #tpu.memory_space<semaphore_mem>> -> memref<!tpu.dma_semaphore, #tpu.memory_space<semaphore_mem>>
    tpu.wait_dma2 semaphore(%188 : memref<!tpu.dma_semaphore, #tpu.memory_space<semaphore_mem>>) src(%185 : memref<1x32xf32, #tpu.memory_space<any>>) dst(%186 : memref<1x32xf32, #tpu.memory_space<vmem>>)
    %c7_i32_116 = arith.constant 7 : i32
    %c0_i32_117 = arith.constant 0 : i32
    %c0_i32_118 = arith.constant 0 : i32
    %189 = tpu.memref_slice %arg2[%c0_i32_117, %c0_i32_118] : memref<16x32xf32, #tpu.memory_space<any>> -> memref<1x32xf32, #tpu.memory_space<any>>
    %c0_i32_119 = arith.constant 0 : i32
    %c0_i32_120 = arith.constant 0 : i32
    %190 = tpu.memref_slice %arg3[%c0_i32_119, %c0_i32_120] : memref<8x32xf32, #tpu.memory_space<vmem>> -> memref<1x32xf32, #tpu.memory_space<vmem>>
    %191 = tpu.memref_slice %arg4[%c7_i32_116] : memref<8x!tpu.dma_semaphore, #tpu.memory_space<semaphore_mem>> -> memref<1x!tpu.dma_semaphore, #tpu.memory_space<semaphore_mem>>
    %192 = tpu.memref_squeeze %191 : memref<1x!tpu.dma_semaphore, #tpu.memory_space<semaphore_mem>> -> memref<!tpu.dma_semaphore, #tpu.memory_space<semaphore_mem>>
    tpu.wait_dma2 semaphore(%192 : memref<!tpu.dma_semaphore, #tpu.memory_space<semaphore_mem>>) src(%189 : memref<1x32xf32, #tpu.memory_space<any>>) dst(%190 : memref<1x32xf32, #tpu.memory_space<vmem>>)
    %c8_i32_121 = arith.constant 8 : i32
    return
  }
  func.func @transform_1(%arg0: i32, %arg1: memref<8xi32, #tpu.memory_space<smem>>) -> (i32, i32) {
    %c0_i32 = arith.constant 0 : i32
    %c0_i32_0 = arith.constant 0 : i32
    return %arg0, %c0_i32 : i32, i32
  }
}

</mosaic_0001>

<llo_original>
// kernel: tpu_custom_call.1
$region0: #{tpu_custom_call.1}
  #allocation0 [shape = 'u32[]', space=smem, size = 0x4, offset = 0x4, fixed_abs, tag = 'smem constant byte address 0x4 - core index']
  #allocation1 [shape = 'u32[72,128]{1,0:T(1,128)}', space=vmem, size = 0x9000, scoped, tag = 'internal scratch']
  #allocation2 [shape = 's32[8]{0}', space=sflag, size = 0x20, scoped, tag = 'scratch operand']
  #allocation3 [shape = 's32[1]{0}', space=sflag, size = 0x4, scoped, tag = 'scoped memory for tpu_custom_call.1']
  #allocation4 [shape = 'u8[512]{0}', space=smem, size = 0x200, scoped, tag = 'prefetched SMEM operand 0']
  #allocation7 [shape = 's32[]', space=sflag, size = 0x4, offset = 0, fixed_abs, tag = 'sflag constant byte address 0x0 - dummy sync flag']
  #allocation8 [shape = 's32[]', space=sflag, size = 0x4, offset = 0, fixed_abs, tag = 'sflag constant byte address 0x0 - dummy sync flag']
  #allocation9 [shape = 'u32[]', space=smem, size = 0x4, offset = 0x44, fixed_abs, tag = 'smem constant byte address 0x44 - assertion arg 0']
  #allocation10 [shape = 'u32[]', space=smem, size = 0x4, offset = 0x48, fixed_abs, tag = 'smem constant byte address 0x48 - assertion arg 1']
  #allocation11 [shape = 's32[]', space=sflag, size = 0x4, offset = 0, fixed_abs, tag = 'sflag constant byte address 0x0 - dummy sync flag']
  #allocation12 [shape = 's32[]', space=sflag, size = 0x4, offset = 0, fixed_abs, tag = 'sflag constant byte address 0x0 - dummy sync flag']
  #allocation13 [shape = 's32[]', space=sflag, size = 0x4, offset = 0, fixed_abs, tag = 'sflag constant byte address 0x0 - dummy sync flag']
  #allocation14 [shape = 's32[]', space=sflag, size = 0x4, offset = 0, fixed_abs, tag = 'sflag constant byte address 0x0 - dummy sync flag']
  #allocation15 [shape = 's32[]', space=sflag, size = 0x4, offset = 0, fixed_abs, tag = 'sflag constant byte address 0x0 - dummy sync flag']
  #allocation16 [shape = 's32[]', space=sflag, size = 0x4, offset = 0, fixed_abs, tag = 'sflag constant byte address 0x0 - dummy sync flag']
  #allocation17 [shape = 's32[]', space=sflag, size = 0x4, offset = 0, fixed_abs, tag = 'sflag constant byte address 0x0 - dummy sync flag']
  #allocation18 [shape = 's32[]', space=sflag, size = 0x4, offset = 0, fixed_abs, tag = 'sflag constant byte address 0x0 - dummy sync flag']
  #allocation19 [shape = 's32[]', space=sflag, size = 0x4, offset = 0, fixed_abs, tag = 'sflag constant byte address 0x0 - dummy sync flag']
  #allocation20 [shape = 's32[]', space=sflag, size = 0x4, offset = 0, fixed_abs, tag = 'sflag constant byte address 0x0 - dummy sync flag']
  #allocation21 [shape = 's32[]', space=sflag, size = 0x4, offset = 0, fixed_abs, tag = 'sflag constant byte address 0x0 - dummy sync flag']
  #allocation22 [shape = 's32[]', space=sflag, size = 0x4, offset = 0, fixed_abs, tag = 'sflag constant byte address 0x0 - dummy sync flag']
  #allocation23 [shape = 's32[]', space=sflag, size = 0x4, offset = 0, fixed_abs, tag = 'sflag constant byte address 0x0 - dummy sync flag']
  #allocation24 [shape = 's32[]', space=sflag, size = 0x4, offset = 0, fixed_abs, tag = 'sflag constant byte address 0x0 - dummy sync flag']
  %s0 = inlined_call_operand.hbm [shape: s32[8], index: 0, kind: input, shape index: {}]
  %s1 = inlined_call_operand.hbm [shape: f32[16,32], index: 1, kind: input, shape index: {}]
  %s2 = inlined_call_operand.hbm [shape: f32[8,32], index: 2, kind: output, shape index: {}]
  %s3 = sld [smem:[#allocation0]]
  $region42: #{tpu_custom_call.1} parent=0
    _
  %s5 = ssub.s32 1, %s3
  %s6 = scalar_select 0, %s5, %s3
  %s8 = sshll.u32 %s0, 4
  %s9 = int_to_ptr.hbm [resolvable:$true] %s8
  %11 = dma.hbm_to_smem %s9, 16, [#allocation4], [#allocation3]
  %13 = dma.done [#allocation3], 16
  %14 = sfence
  $region1: #{tpu_custom_call.1} parent=0
    #allocation5 [shape = 'u8[4096]{0}', space=vmem, size = 0x1000, scoped, tag = 'output window, operand 0, single buffered']
    #allocation6 [shape = 's32[1]{0}', space=sflag, size = 0x4, scoped, tag = 'scoped memory for tpu_custom_call.1']
    %15 = vsyncpa [#allocation6], 0
    %s16 = smul.u32 0, 8
    %s17 = sld [smem:[#allocation4 + %s16]]
    %s18 = scalar_lea.hbm %s1, %s17
    // Predicated region
    $region2: #{tpu_custom_call.1} parent=1 // pred_check
      _
    $region3: #{tpu_custom_call.1} parent=1 // pred_check_branch
      %20 = sbr.rel target = $region5
    $region4: #{tpu_custom_call.1} parent=1 // pred_region
      %21 = sst [smem:[#allocation9]] [#allocation8]
      %22 = sst [smem:[#allocation10]] [#allocation7]
    $region5: #{tpu_custom_call.1} parent=1 // pred_fallthru
      _
    %24 = shalt.err (0)
    %s26 = sshll.u32 %s18, 4
    %s27 = int_to_ptr.hbm [resolvable:$true] %s26
    %s28 = sshll.u32 [#allocation5], 4
    %s29 = int_to_ptr.vmem [resolvable:$true] %s28
    %31 = dma.hbm_to_vmem [thread:$0]  %s27, 16, %s29, [#allocation2]
    %s32 = sadd.s32 %s16, 1
    %s33 = sld [smem:[#allocation4 + %s32]]
    %s34 = scalar_lea.hbm %s1, %s33
    %s35 = scalar_lea.vmem [#allocation5], 1
    %s36 = scalar_lea.sflag [#allocation2], 1
    // Predicated region
    $region6: #{tpu_custom_call.1} parent=1 // pred_check
      _
    $region7: #{tpu_custom_call.1} parent=1 // pred_check_branch
      %38 = sbr.rel target = $region9
    $region8: #{tpu_custom_call.1} parent=1 // pred_region
      %39 = sst [smem:[#allocation9]] [#allocation12]
      %40 = sst [smem:[#allocation10]] [#allocation11]
    $region9: #{tpu_custom_call.1} parent=1 // pred_fallthru
      _
    %42 = shalt.err (0)
    %s44 = sshll.u32 %s34, 4
    %s45 = int_to_ptr.hbm [resolvable:$true] %s44
    %s46 = sshll.u32 %s35, 4
    %s47 = int_to_ptr.vmem [resolvable:$true] %s46
    %49 = dma.hbm_to_vmem [thread:$0]  %s45, 16, %s47, %s36
    %s50 = sadd.s32 %s16, 2
    %s51 = sld [smem:[#allocation4 + %s50]]
    %s52 = scalar_lea.hbm %s1, %s51
    %s53 = scalar_lea.vmem [#allocation5], 2
    %s54 = scalar_lea.sflag [#allocation2], 2
    // Predicated region
    $region10: #{tpu_custom_call.1} parent=1 // pred_check
      _
    $region11: #{tpu_custom_call.1} parent=1 // pred_check_branch
      %56 = sbr.rel target = $region13
    $region12: #{tpu_custom_call.1} parent=1 // pred_region
      %57 = sst [smem:[#allocation9]] [#allocation14]
      %58 = sst [smem:[#allocation10]] [#allocation13]
    $region13: #{tpu_custom_call.1} parent=1 // pred_fallthru
      _
    %60 = shalt.err (0)
    %s62 = sshll.u32 %s52, 4
    %s63 = int_to_ptr.hbm [resolvable:$true] %s62
    %s64 = sshll.u32 %s53, 4
    %s65 = int_to_ptr.vmem [resolvable:$true] %s64
    %67 = dma.hbm_to_vmem [thread:$0]  %s63, 16, %s65, %s54
    %s68 = sadd.s32 %s16, 3
    %s69 = sld [smem:[#allocation4 + %s68]]
    %s70 = scalar_lea.hbm %s1, %s69
    %s71 = scalar_lea.vmem [#allocation5], 3
    %s72 = scalar_lea.sflag [#allocation2], 3
    // Predicated region
    $region14: #{tpu_custom_call.1} parent=1 // pred_check
      _
    $region15: #{tpu_custom_call.1} parent=1 // pred_check_branch
      %74 = sbr.rel target = $region17
    $region16: #{tpu_custom_call.1} parent=1 // pred_region
      %75 = sst [smem:[#allocation9]] [#allocation16]
      %76 = sst [smem:[#allocation10]] [#allocation15]
    $region17: #{tpu_custom_call.1} parent=1 // pred_fallthru
      _
    %78 = shalt.err (0)
    %s80 = sshll.u32 %s70, 4
    %s81 = int_to_ptr.hbm [resolvable:$true] %s80
    %s82 = sshll.u32 %s71, 4
    %s83 = int_to_ptr.vmem [resolvable:$true] %s82
    %85 = dma.hbm_to_vmem [thread:$0]  %s81, 16, %s83, %s72
    %s86 = sadd.s32 %s16, 4
    %s87 = sld [smem:[#allocation4 + %s86]]
    %s88 = scalar_lea.hbm %s1, %s87
    %s89 = scalar_lea.vmem [#allocation5], 4
    %s90 = scalar_lea.sflag [#allocation2], 4
    // Predicated region
    $region18: #{tpu_custom_call.1} parent=1 // pred_check
      _
    $region19: #{tpu_custom_call.1} parent=1 // pred_check_branch
      %92 = sbr.rel target = $region21
    $region20: #{tpu_custom_call.1} parent=1 // pred_region
      %93 = sst [smem:[#allocation9]] [#allocation18]
      %94 = sst [smem:[#allocation10]] [#allocation17]
    $region21: #{tpu_custom_call.1} parent=1 // pred_fallthru
      _
    %96 = shalt.err (0)
    %s98 = sshll.u32 %s88, 4
    %s99 = int_to_ptr.hbm [resolvable:$true] %s98
    %s100 = sshll.u32 %s89, 4
    %s101 = int_to_ptr.vmem [resolvable:$true] %s100
    %103 = dma.hbm_to_vmem [thread:$0]  %s99, 16, %s101, %s90
    %s104 = sadd.s32 %s16, 5
    %s105 = sld [smem:[#allocation4 + %s104]]
    %s106 = scalar_lea.hbm %s1, %s105
    %s107 = scalar_lea.vmem [#allocation5], 5
    %s108 = scalar_lea.sflag [#allocation2], 5
    // Predicated region
    $region22: #{tpu_custom_call.1} parent=1 // pred_check
      _
    $region23: #{tpu_custom_call.1} parent=1 // pred_check_branch
      %110 = sbr.rel target = $region25
    $region24: #{tpu_custom_call.1} parent=1 // pred_region
      %111 = sst [smem:[#allocation9]] [#allocation20]
      %112 = sst [smem:[#allocation10]] [#allocation19]
    $region25: #{tpu_custom_call.1} parent=1 // pred_fallthru
      _
    %114 = shalt.err (0)
    %s116 = sshll.u32 %s106, 4
    %s117 = int_to_ptr.hbm [resolvable:$true] %s116
    %s118 = sshll.u32 %s107, 4
    %s119 = int_to_ptr.vmem [resolvable:$true] %s118
    %121 = dma.hbm_to_vmem [thread:$0]  %s117, 16, %s119, %s108
    %s122 = sadd.s32 %s16, 6
    %s123 = sld [smem:[#allocation4 + %s122]]
    %s124 = scalar_lea.hbm %s1, %s123
    %s125 = scalar_lea.vmem [#allocation5], 6
    %s126 = scalar_lea.sflag [#allocation2], 6
    // Predicated region
    $region26: #{tpu_custom_call.1} parent=1 // pred_check
      _
    $region27: #{tpu_custom_call.1} parent=1 // pred_check_branch
      %128 = sbr.rel target = $region29
    $region28: #{tpu_custom_call.1} parent=1 // pred_region
      %129 = sst [smem:[#allocation9]] [#allocation22]
      %130 = sst [smem:[#allocation10]] [#allocation21]
    $region29: #{tpu_custom_call.1} parent=1 // pred_fallthru
      _
    %132 = shalt.err (0)
    %s134 = sshll.u32 %s124, 4
    %s135 = int_to_ptr.hbm [resolvable:$true] %s134
    %s136 = sshll.u32 %s125, 4
    %s137 = int_to_ptr.vmem [resolvable:$true] %s136
    %139 = dma.hbm_to_vmem [thread:$0]  %s135, 16, %s137, %s126
    %s140 = sadd.s32 %s16, 7
    %s141 = sld [smem:[#allocation4 + %s140]]
    %s142 = scalar_lea.hbm %s1, %s141
    %s143 = scalar_lea.vmem [#allocation5], 7
    %s144 = scalar_lea.sflag [#allocation2], 7
    // Predicated region
    $region30: #{tpu_custom_call.1} parent=1 // pred_check
      _
    $region31: #{tpu_custom_call.1} parent=1 // pred_check_branch
      %146 = sbr.rel target = $region33
    $region32: #{tpu_custom_call.1} parent=1 // pred_region
      %147 = sst [smem:[#allocation9]] [#allocation24]
      %148 = sst [smem:[#allocation10]] [#allocation23]
    $region33: #{tpu_custom_call.1} parent=1 // pred_fallthru
      _
    %150 = shalt.err (0)
    %s152 = sshll.u32 %s142, 4
    %s153 = int_to_ptr.hbm [resolvable:$true] %s152
    %s154 = sshll.u32 %s143, 4
    %s155 = int_to_ptr.vmem [resolvable:$true] %s154
    %157 = dma.hbm_to_vmem [thread:$0]  %s153, 16, %s155, %s144
    %s158 = smul.u32 1, 1
    %s159 = sshll.u32 %s158, 4
    %160 = dma.done [#allocation2], %s159
    %s161 = sshll.u32 %s158, 4
    %162 = dma.done %s36, %s161
    %s163 = sshll.u32 %s158, 4
    %164 = dma.done %s54, %s163
    %s165 = sshll.u32 %s158, 4
    %166 = dma.done %s72, %s165
    %s167 = sshll.u32 %s158, 4
    %168 = dma.done %s90, %s167
    %s169 = sshll.u32 %s158, 4
    %170 = dma.done %s108, %s169
    %s171 = sshll.u32 %s158, 4
    %172 = dma.done %s126, %s171
    %s173 = sshll.u32 %s158, 4
    %174 = dma.done %s144, %s173
    // Predicated region
    $region34: #{tpu_custom_call.1} parent=1 // pred_check
      _
    $region35: #{tpu_custom_call.1} parent=1 // pred_check_branch
      %176 = sbr.rel (0) target = $region37
    $region36: #{tpu_custom_call.1} parent=1 // pred_region
      %178 = vsyncadd [#allocation6], 0
      %s180 = sshll.u32 [#allocation5], 4
      %s181 = int_to_ptr.vmem [resolvable:$true] %s180
      %s182 = sshll.u32 %s2, 4
      %s183 = int_to_ptr.hbm [resolvable:$true] %s182
      %185 = dma.vmem_to_hbm [thread:$0]  %s181, 128, %s183, [#allocation6]
    $region37: #{tpu_custom_call.1} parent=1 // pred_fallthru
      _
    // Predicated region
    $region38: #{tpu_custom_call.1} parent=1 // pred_check
      _
    $region39: #{tpu_custom_call.1} parent=1 // pred_check_branch
      %187 = sbr.rel (0) target = $region41
    $region40: #{tpu_custom_call.1} parent=1 // pred_region
      %189 = dma.done [#allocation6], 128
    $region41: #{tpu_custom_call.1} parent=1 // pred_fallthru
      _
    %190 = vsyncpa [#allocation6], 1
  %191 = vsyncmov [#allocation2]
  %s192 = vpop.sfrf %191
  %p193 = scmp.eq.s32.totalorder %s192, 0
  %p194 = pneg %p193
  %196 = shalt.err (%p194)
  %s197 = scalar_lea.sflag [#allocation2], 1
  %198 = vsyncmov %s197
  %s199 = vpop.sfrf %198
  %p200 = scmp.eq.s32.totalorder %s199, 0
  %p201 = pneg %p200
  %203 = shalt.err (%p201)
  %s204 = scalar_lea.sflag [#allocation2], 2
  %205 = vsyncmov %s204
  %s206 = vpop.sfrf %205
  %p207 = scmp.eq.s32.totalorder %s206, 0
  %p208 = pneg %p207
  %210 = shalt.err (%p208)
  %s211 = scalar_lea.sflag [#allocation2], 3
  %212 = vsyncmov %s211
  %s213 = vpop.sfrf %212
  %p214 = scmp.eq.s32.totalorder %s213, 0
  %p215 = pneg %p214
  %217 = shalt.err (%p215)
  %s218 = scalar_lea.sflag [#allocation2], 4
  %219 = vsyncmov %s218
  %s220 = vpop.sfrf %219
  %p221 = scmp.eq.s32.totalorder %s220, 0
  %p222 = pneg %p221
  %224 = shalt.err (%p222)
  %s225 = scalar_lea.sflag [#allocation2], 5
  %226 = vsyncmov %s225
  %s227 = vpop.sfrf %226
  %p228 = scmp.eq.s32.totalorder %s227, 0
  %p229 = pneg %p228
  %231 = shalt.err (%p229)
  %s232 = scalar_lea.sflag [#allocation2], 6
  %233 = vsyncmov %s232
  %s234 = vpop.sfrf %233
  %p235 = scmp.eq.s32.totalorder %s234, 0
  %p236 = pneg %p235
  %238 = shalt.err (%p236)
  %s239 = scalar_lea.sflag [#allocation2], 7
  %240 = vsyncmov %s239
  %s241 = vpop.sfrf %240
  %p242 = scmp.eq.s32.totalorder %s241, 0
  %p243 = pneg %p242
  %245 = shalt.err (%p243)

</llo_original>
